<compile_context>
chip_gen: v7x
topology: tpu7x:2x2x1
jax: 0.10.0
libtpu: 0.0.40
codegen_flags: <defaults>
</compile_context>

<pallas_src>
import math

import numpy as np
import jax
import jax.numpy as jnp
from jax.experimental import pallas as pl
from jax.experimental.pallas import tpu as pltpu


def _timestep_emb_kernel(t_ref, freqs_ref, cos_mask_ref, out_ref):
    # t_ref:        (TB, 1)     f32  timesteps column (rank-1 broadcast source)
    # freqs_ref:    (1, C_pad)  f32  [freqs | freqs | 0...] * scale  (constant table)
    # cos_mask_ref: (1, C_pad)  f32  1.0 on lanes that take cos(), 0.0 on sin() lanes
    # out_ref:      (TB, C_pad) f32  lane-dense output slab (single unmasked store)
    emb = t_ref[...] * freqs_ref[...]                      # (TB, C_pad) outer product (VPU)
    out = jnp.where(cos_mask_ref[...] != 0.0, jnp.cos(emb), jnp.sin(emb))
    out_ref[...] = out.astype(out_ref.dtype)


def _build_tables(num_channels, flip_sin_to_cos, downscale_freq_shift, scale,
                  max_period, c_pad):
    """Constant-fold the frequency table and the cos/sin lane-select mask (numpy)."""
    half_dim = num_channels // 2
    exponent = -math.log(max_period) * np.arange(half_dim, dtype=np.float32)
    exponent = exponent / np.float32(half_dim - downscale_freq_shift)
    freqs = (np.exp(exponent) * np.float32(scale)).astype(np.float32)  # (half_dim,)

    freqs_full = np.zeros((1, c_pad), np.float32)
    cos_mask = np.zeros((1, c_pad), np.float32)
    freqs_full[0, :half_dim] = freqs
    freqs_full[0, half_dim:2 * half_dim] = freqs
    if flip_sin_to_cos:
        cos_mask[0, :half_dim] = 1.0              # output layout: [cos | sin | pad]
    else:
        cos_mask[0, half_dim:2 * half_dim] = 1.0  # output layout: [sin | cos | pad]
    # Odd num_channels: lane 2*half_dim has freq 0 and mask 0 -> sin(0) = 0, which is
    # exactly the zero column F.pad adds. Lanes >= num_channels are layout padding and
    # are sliced off by the wrapper.
    return freqs_full, cos_mask


def _pick_batch_tile(b):
    """Return (tile, padded_batch). Tile second-to-last dim is kept a multiple of 8
    whenever the block is smaller than the array (8-sublane layout rule)."""
    if b <= 4096:
        # One block (block == full array, so no divisibility requirement). At this size
        # the ~0.35us per-grid-step overhead would dominate a kernel this small.
        return b, b
    # Large batches: tile over B so output writeback pipelines behind compute.
    tb = 1024                               # 1024 x 128 x 4B x 2 buffers = 1 MiB VMEM
    b_pad = ((b + tb - 1) // tb) * tb       # pad rows; wrapper slices them back off
    return tb, b_pad


def timesteps_forward(timesteps, num_channels, flip_sin_to_cos,
                      downscale_freq_shift, scale=1.0, max_period=10000):
    """JAX/Pallas equivalent of Timesteps.forward (timesteps: 1-D array)."""
    assert timesteps.ndim == 1, "Timesteps should be a 1d-array"
    b = timesteps.shape[0]
    # Lane-dense output width: round num_channels up to a multiple of 128.
    c_pad = max(128, ((num_channels + 127) // 128) * 128)

    freqs_full, cos_mask = _build_tables(
        num_channels, flip_sin_to_cos, downscale_freq_shift, scale, max_period, c_pad)

    tb, b_pad = _pick_batch_tile(b)
    grid = (b_pad // tb,)

    t2d = timesteps.astype(jnp.float32).reshape(b, 1)
    if b_pad != b:
        t2d = jnp.pad(t2d, ((0, b_pad - b), (0, 0)))

    out = pl.pallas_call(
        _timestep_emb_kernel,
        out_shape=jax.ShapeDtypeStruct((b_pad, c_pad), jnp.float32),
        grid=grid,
        in_specs=[
            pl.BlockSpec((tb, 1), lambda i: (i, 0)),       # timesteps column
            pl.BlockSpec((1, c_pad), lambda i: (0, 0)),    # constant freq table
            pl.BlockSpec((1, c_pad), lambda i: (0, 0)),    # constant cos/sin mask
        ],
        out_specs=pl.BlockSpec((tb, c_pad), lambda i: (i, 0)),
        compiler_params=pltpu.CompilerParams(
            dimension_semantics=("parallel",)),            # lets v7x use both TCs when tiled
    )(t2d, jnp.asarray(freqs_full), jnp.asarray(cos_mask))

    # Slice the row/lane padding off outside the kernel (keeps in-kernel stores unmasked).
    return out[:b, :num_channels]
    # TODO(synk): for production shapes (B<=64) this op is launch-overhead bound; ideally
    # fuse it as a prologue into the consumer (timestep-MLP) kernel instead of a
    # standalone pallas_call.


def _reference(timesteps, num_channels, flip_sin_to_cos, downscale_freq_shift,
               scale=1.0, max_period=10000):
    # Pure-JAX reference mirroring the PyTorch code, for sanity checking.
    half_dim = num_channels // 2
    exponent = -math.log(max_period) * jnp.arange(half_dim, dtype=jnp.float32)
    exponent = exponent / (half_dim - downscale_freq_shift)
    emb = jnp.exp(exponent)
    emb = timesteps[:, None].astype(jnp.float32) * emb[None, :]
    emb = scale * emb
    emb = jnp.concatenate([jnp.sin(emb), jnp.cos(emb)], axis=-1)
    if flip_sin_to_cos:
        emb = jnp.concatenate([emb[:, half_dim:], emb[:, :half_dim]], axis=-1)
    if num_channels % 2 == 1:
        emb = jnp.pad(emb, ((0, 0), (0, 1)))
    return emb


if __name__ == "__main__":
    key = jax.random.PRNGKey(0)
    batch = 8
    # Deterministic "timesteps" (diffusion steps in [0, 1000))
    timesteps = jax.random.randint(key, (batch,), 0, 1000).astype(jnp.float32)

    # Two configs: even channels + flip (typical UNet), odd channels + no flip (pad path).
    configs = [
        dict(num_channels=32, flip_sin_to_cos=True, downscale_freq_shift=0.0),
        dict(num_channels=33, flip_sin_to_cos=False, downscale_freq_shift=1.0),
    ]

    for cfg in configs:
        out = timesteps_forward(timesteps, **cfg)
        out = jax.block_until_ready(out)
        ref = _reference(timesteps, **cfg)
        assert out.shape == (batch, cfg["num_channels"]), out.shape
        # Tolerance note: the kernel's frequency table is folded with numpy while the
        # reference uses jnp.exp; a ~1-ulp fp32 difference in a frequency is amplified
        # by t up to ~1000 rad inside sin/cos, so independent fp32 implementations can
        # legitimately differ by O(1e-4) here (same vs. PyTorch fp32).
        assert jnp.allclose(out, ref, atol=5e-4, rtol=1e-4), (
            f"mismatch vs reference for {cfg}: max abs err "
            f"{jnp.max(jnp.abs(out - ref))}")

    print("KERNEL_OK")
</pallas_src>

<mosaic_0001>
module attributes {stable_mosaic.version = 11 : i64} {
  func.func @_timestep_emb_kernel(%arg0: i32, %arg1: memref<8x1xf32, #tpu.memory_space<vmem>>, %arg2: memref<1x128xf32, #tpu.memory_space<vmem>>, %arg3: memref<1x128xf32, #tpu.memory_space<vmem>>, %arg4: memref<8x128xf32, #tpu.memory_space<vmem>>) attributes {dimension_semantics = [#tpu.dimension_semantics<parallel>], iteration_bounds = array<i64: 1>, scalar_prefetch = 0 : i64, scratch_operands = 0 : i64, tpu.core_type = #tpu.core_type<tc>, window_params = [{transform_indices = @transform_0, window_bounds = array<i64: 8, 1>}, {pipeline_mode = #tpu.pipeline_mode<synchronous>, transform_indices = @transform_1, window_bounds = array<i64: 1, 128>}, {pipeline_mode = #tpu.pipeline_mode<synchronous>, transform_indices = @transform_2, window_bounds = array<i64: 1, 128>}, {transform_indices = @transform_3, window_bounds = array<i64: 8, 128>}]} {
    %c0 = arith.constant 0 : index
    %c0_0 = arith.constant 0 : index
    %0 = vector.load %arg1[%c0, %c0_0] : memref<8x1xf32, #tpu.memory_space<vmem>>, vector<8x1xf32>
    %c0_1 = arith.constant 0 : index
    %c0_2 = arith.constant 0 : index
    %1 = vector.load %arg2[%c0_1, %c0_2] : memref<1x128xf32, #tpu.memory_space<vmem>>, vector<1x128xf32>
    %2 = vector.broadcast %0 : vector<8x1xf32> to vector<8x128xf32>
    %3 = vector.broadcast %1 : vector<1x128xf32> to vector<8x128xf32>
    %4 = arith.mulf %2, %3 : vector<8x128xf32>
    %c0_3 = arith.constant 0 : index
    %c0_4 = arith.constant 0 : index
    %5 = vector.load %arg3[%c0_3, %c0_4] : memref<1x128xf32, #tpu.memory_space<vmem>>, vector<1x128xf32>
    %cst = arith.constant 0.000000e+00 : f32
    %6 = vector.broadcast %cst : f32 to vector<1x128xf32>
    %7 = arith.cmpf one, %5, %6 : vector<1x128xf32>
    %8 = math.cos %4 : vector<8x128xf32>
    %9 = math.sin %4 : vector<8x128xf32>
    %10 = vector.shape_cast %7 : vector<1x128xi1> to vector<1x128xi1>
    %11 = vector.broadcast %10 : vector<1x128xi1> to vector<8x128xi1>
    %12 = arith.select %11, %8, %9 : vector<8x128xi1>, vector<8x128xf32>
    %c0_5 = arith.constant 0 : index
    %c0_6 = arith.constant 0 : index
    %13 = vector.load %arg4[%c0_5, %c0_6] : memref<8x128xf32, #tpu.memory_space<vmem>>, vector<8x128xf32>
    tpu.vector_store %arg4[%c0_5, %c0_6], %12 {strides = array<i32>} : memref<8x128xf32, #tpu.memory_space<vmem>>, vector<8x128xf32>,
    return
  }
  func.func @transform_0(%arg0: i32) -> (i32, i32) {
    %c0_i32 = arith.constant 0 : i32
    %c0_i32_0 = arith.constant 0 : i32
    return %arg0, %c0_i32 : i32, i32
  }
  func.func @transform_1(%arg0: i32) -> (i32, i32) {
    %c0_i32 = arith.constant 0 : i32
    %c0_i32_0 = arith.constant 0 : i32
    %c0_i32_1 = arith.constant 0 : i32
    return %c0_i32, %c0_i32_0 : i32, i32
  }
  func.func @transform_2(%arg0: i32) -> (i32, i32) {
    %c0_i32 = arith.constant 0 : i32
    %c0_i32_0 = arith.constant 0 : i32
    %c0_i32_1 = arith.constant 0 : i32
    return %c0_i32, %c0_i32_0 : i32, i32
  }
  func.func @transform_3(%arg0: i32) -> (i32, i32) {
    %c0_i32 = arith.constant 0 : i32
    %c0_i32_0 = arith.constant 0 : i32
    return %arg0, %c0_i32 : i32, i32
  }
}

</mosaic_0001>

<llo_original>
// kernel: tpu_custom_call.1
$region0: #{tpu_custom_call.1}
  #allocation0 [shape = 'u32[]', space=smem, size = 0x4, offset = 0x4, fixed_abs, tag = 'smem constant byte address 0x4 - core index']
  #allocation1 [shape = 'u32[144,128]{1,0:T(1,128)}', space=vmem, size = 0x12000, scoped, tag = 'internal scratch']
  %s0 = inlined_call_operand.vmem [shape: f32[8,1], index: 0, kind: input, shape index: {}]
  %s1 = inlined_call_operand.vmem [shape: f32[1,128], index: 1, kind: input, shape index: {}]
  %s2 = inlined_call_operand.vmem [shape: f32[1,128], index: 2, kind: input, shape index: {}]
  %s3 = inlined_call_operand.hbm [shape: f32[8,128], index: 3, kind: output, shape index: {}]
  %s4 = sld [smem:[#allocation0]]
  $region22: #{tpu_custom_call.1} parent=0
    _
  %s6 = ssub.s32 1, %s4
  %s7 = scalar_select 0, %s6, %s4
  $region1: #{tpu_custom_call.1} parent=0
    #allocation2 [shape = 'u8[4096]{0}', space=vmem, size = 0x1000, scoped, tag = 'output window, operand 0, single buffered']
    #allocation3 [shape = 's32[1]{0}', space=sflag, size = 0x4, scoped, tag = 'scoped memory for tpu_custom_call.1']
    %8 = vsyncpa [#allocation3], 0
    // Predicated region
    $region2: #{tpu_custom_call.1} parent=1 // pred_check
      _
    $region3: #{tpu_custom_call.1} parent=1 // pred_check_branch
      %10 = sbr.rel (0) target = $region5
    $region4: #{tpu_custom_call.1} parent=1 // pred_region
      _
    $region5: #{tpu_custom_call.1} parent=1 // pred_fallthru
      _
    // Predicated region
    $region6: #{tpu_custom_call.1} parent=1 // pred_check
      _
    $region7: #{tpu_custom_call.1} parent=1 // pred_check_branch
      %12 = sbr.rel (0) target = $region9
    $region8: #{tpu_custom_call.1} parent=1 // pred_region
      _
    $region9: #{tpu_custom_call.1} parent=1 // pred_fallthru
      _
    // Predicated region
    $region10: #{tpu_custom_call.1} parent=1 // pred_check
      _
    $region11: #{tpu_custom_call.1} parent=1 // pred_check_branch
      %14 = sbr.rel (0) target = $region13
    $region12: #{tpu_custom_call.1} parent=1 // pred_region
      _
    $region13: #{tpu_custom_call.1} parent=1 // pred_fallthru
      _
    %v15 = vld [vmem:[%s0] sm:$0xff]
    %v16 = vld [vmem:[%s1] sm:$0x1]
    %18 = vset.pattern.permute.xlu0 0
    %19 = vperm.xlu0 %18, %v15
    %v20 = vpop.permute.xlu0 %19
    %v23 = vlaneseq
    %v24 = vshrl.u32 %v23, 7
    %v25 = vsub.s32 0, %v24
    %v26 = vrot.slane %v16, %v25
    %v28 = vmul.f32 %v20, %v26
    %v29 = vld [vmem:[%s2] sm:$0x1]
    %vm30 = vcmp.ne.f32.partialorder %v29, 0.0
    %v31 = vand.u32 2147483647, %v28
    %vm32 = vcmp.le.f32.partialorder %v31, 0.7853982
    %vm33 = vcmp.lt.s32.totalorder %v28, 0
    %v34 = vand.u32 %v28, 2139095040
    %v35 = vshrl.u32 %v34, 23
    %v36 = vsub.s32 %v35, 127
    %v37 = vand.u32 2147483647, %v28
    %v38 = vand.u32 %v37, 8388607
    %v39 = vor.u32 %v38, 8388608
    %v40 = vsub.s32 0, %v39
    %v41 = vadd.s32 %v36, 1
    %vm42 = vcmp.gt.s32.totalorder %v41, 0
    %v43 = vsel %vm42, %v41, 0
    %v44 = vshrl.u32 %v43, 5
    %v45 = vand.u32 %v43, 31
    %v46 = vsub.s32 32, %v45
    %v47 = vshrl.u32 683565275, %v46
    %v48 = vshll.u32 683565275, %v45
    %v49 = vshrl.u32 2475754826, %v46
    %v50 = vor.u32 %v48, %v49
    %v51 = vshll.u32 2475754826, %v45
    %v52 = vshrl.u32 2131351028, %v46
    %v53 = vor.u32 %v51, %v52
    %v54 = vshll.u32 2131351028, %v45
    %v55 = vshrl.u32 2102212464, %v46
    %v56 = vor.u32 %v54, %v55
    %v57 = vshll.u32 2102212464, %v45
    %v58 = vshrl.u32 920167782, %v46
    %v59 = vor.u32 %v57, %v58
    %v60 = vshll.u32 920167782, %v45
    %v61 = vshrl.u32 1326507024, %v46
    %v62 = vor.u32 %v60, %v61
    %vm63 = vcmp.lt.s32.totalorder %v44, 1
    %vm64 = vcmp.lt.s32.totalorder %v44, 2
    %vm65 = vcmp.lt.s32.totalorder %v44, 3
    %vm66 = vcmp.lt.s32.totalorder %v44, 4
    %v67 = vsel %vm63, %v47, %v50
    %v68 = vsel %vm66, %v56, 2102212464
    %v69 = vsel %vm65, %v53, %v68
    %v70 = vsel %vm64, %v67, %v69
    %v71 = vsel %vm63, %v50, %v53
    %v72 = vsel %vm66, %v59, 920167782
    %v73 = vsel %vm65, %v56, %v72
    %v74 = vsel %vm64, %v71, %v73
    %v75 = vsel %vm63, %v53, %v56
    %v76 = vsel %vm66, %v62, 1326507024
    %v77 = vsel %vm65, %v59, %v76
    %v78 = vsel %vm64, %v75, %v77
    %v79 = vshll.u32 %v39, 8
    %v80 = vmul.u32.u64.compose %v79, %v78
    %v81 = vextract.low.u32 %v80
    %v82 = vextract.high.u32 %v80
    %v83 = vmul.u32.u64.compose %v79, %v74
    %v84 = vextract.low.u32 %v83
    %v85 = vextract.high.u32 %v83
    %v86 = vmul.u32 %v79, %v70
    %v87 = vadd.s32 %v82, %v84
    %vm88 = vc.u32 %v82, %v84
    %v89 = vadd.s32 %v85, 1
    %v90 = vsel %vm88, %v89, %v85
    %v91 = vadd.s32 %v86, %v90
    %v92 = vadd.s32 %v91, 536870912
    %v93 = vshrl.u32 %v92, 30
    %v94 = vshll.u32 %v93, 30
    %v95 = vsub.s32 %v91, %v94
    %vm96 = vcmp.lt.s32.totalorder %v95, 0
    %v97 = vsub.s32 0, %v95
    %v98 = vsel %vm96, %v97, %v95
    %v99 = vclz %v98
    %v100 = vsub.s32 %v99, 2
    %vm101 = vcmp.gt.s32.totalorder 0, %v100
    %v102 = vsel %vm101, 0, %v100
    %v103 = vsub.s32 32, %v102
    %v104 = vshll.u32 %v95, %v102
    %v105 = vshrl.u32 %v87, %v103
    %v106 = vor.u32 %v104, %v105
    %v107 = vsub.s32 4294967266, %v102
    %v108 = vadd.s32 %v107, 127
    %v109 = vshll.u32 %v108, 23
    %v110 = vor.u32 4788187, %v109
    %v111 = vand.u32 2147483647, %v110
    %v113 = vcvt.s32.f32 %v106
    %v114 = vmul.f32 %v113, %v111
    %v115 = vxor.u32 %v114, 2147483648
    %v116 = vsel %vm33, %v115, %v114
    %v117 = vsub.s32 4, %v93
    %v118 = vsel %vm33, %v117, %v93
    %v119 = vsel %vm32, %v28, %v116
    %v120 = vsel %vm32, 0, %v118
    %v121 = vcosq.f32.pop %v119
    %v122 = vsinq.f32.pop %v119
    %vm123 = vweird.f32 %v28
    %v124 = vand.u32 %v120, 3
    %vm125 = vcmp.lt.s32.totalorder %v124, 2
    %vm126 = vcmp.eq.s32.totalorder %v124, 0
    %v127 = vxor.u32 %v122, 2147483648
    %v128 = vsel %vm126, %v121, %v127
    %vm129 = vcmp.eq.s32.totalorder %v124, 2
    %v130 = vxor.u32 %v121, 2147483648
    %v131 = vsel %vm129, %v130, %v122
    %v132 = vsel %vm125, %v128, %v131
    %v133 = vsel %vm123, nan, %v132
    %v134 = vand.u32 2147483647, %v28
    %vm135 = vcmp.le.f32.partialorder %v134, 0.7853982
    %vm136 = vcmp.lt.s32.totalorder %v28, 0
    %v137 = vand.u32 %v28, 2139095040
    %v138 = vshrl.u32 %v137, 23
    %v139 = vsub.s32 %v138, 127
    %v140 = vand.u32 2147483647, %v28
    %v141 = vand.u32 %v140, 8388607
    %v142 = vor.u32 %v141, 8388608
    %v143 = vsub.s32 0, %v142
    %v144 = vadd.s32 %v139, 1
    %vm145 = vcmp.gt.s32.totalorder %v144, 0
    %v146 = vsel %vm145, %v144, 0
    %v147 = vshrl.u32 %v146, 5
    %v148 = vand.u32 %v146, 31
    %v149 = vsub.s32 32, %v148
    %v150 = vshrl.u32 683565275, %v149
    %v151 = vshll.u32 683565275, %v148
    %v152 = vshrl.u32 2475754826, %v149
    %v153 = vor.u32 %v151, %v152
    %v154 = vshll.u32 2475754826, %v148
    %v155 = vshrl.u32 2131351028, %v149
    %v156 = vor.u32 %v154, %v155
    %v157 = vshll.u32 2131351028, %v148
    %v158 = vshrl.u32 2102212464, %v149
    %v159 = vor.u32 %v157, %v158
    %v160 = vshll.u32 2102212464, %v148
    %v161 = vshrl.u32 920167782, %v149
    %v162 = vor.u32 %v160, %v161
    %v163 = vshll.u32 920167782, %v148
    %v164 = vshrl.u32 1326507024, %v149
    %v165 = vor.u32 %v163, %v164
    %vm166 = vcmp.lt.s32.totalorder %v147, 1
    %vm167 = vcmp.lt.s32.totalorder %v147, 2
    %vm168 = vcmp.lt.s32.totalorder %v147, 3
    %vm169 = vcmp.lt.s32.totalorder %v147, 4
    %v170 = vsel %vm166, %v150, %v153
    %v171 = vsel %vm169, %v159, 2102212464
    %v172 = vsel %vm168, %v156, %v171
    %v173 = vsel %vm167, %v170, %v172
    %v174 = vsel %vm166, %v153, %v156
    %v175 = vsel %vm169, %v162, 920167782
    %v176 = vsel %vm168, %v159, %v175
    %v177 = vsel %vm167, %v174, %v176
    %v178 = vsel %vm166, %v156, %v159
    %v179 = vsel %vm169, %v165, 1326507024
    %v180 = vsel %vm168, %v162, %v179
    %v181 = vsel %vm167, %v178, %v180
    %v182 = vshll.u32 %v142, 8
    %v183 = vmul.u32.u64.compose %v182, %v181
    %v184 = vextract.low.u32 %v183
    %v185 = vextract.high.u32 %v183
    %v186 = vmul.u32.u64.compose %v182, %v177
    %v187 = vextract.low.u32 %v186
    %v188 = vextract.high.u32 %v186
    %v189 = vmul.u32 %v182, %v173
    %v190 = vadd.s32 %v185, %v187
    %vm191 = vc.u32 %v185, %v187
    %v192 = vadd.s32 %v188, 1
    %v193 = vsel %vm191, %v192, %v188
    %v194 = vadd.s32 %v189, %v193
    %v195 = vadd.s32 %v194, 536870912
    %v196 = vshrl.u32 %v195, 30
    %v197 = vshll.u32 %v196, 30
    %v198 = vsub.s32 %v194, %v197
    %vm199 = vcmp.lt.s32.totalorder %v198, 0
    %v200 = vsub.s32 0, %v198
    %v201 = vsel %vm199, %v200, %v198
    %v202 = vclz %v201
    %v203 = vsub.s32 %v202, 2
    %vm204 = vcmp.gt.s32.totalorder 0, %v203
    %v205 = vsel %vm204, 0, %v203
    %v206 = vsub.s32 32, %v205
    %v207 = vshll.u32 %v198, %v205
    %v208 = vshrl.u32 %v190, %v206
    %v209 = vor.u32 %v207, %v208
    %v210 = vsub.s32 4294967266, %v205
    %v211 = vadd.s32 %v210, 127
    %v212 = vshll.u32 %v211, 23
    %v213 = vor.u32 4788187, %v212
    %v214 = vand.u32 2147483647, %v213
    %v216 = vcvt.s32.f32 %v209
    %v217 = vmul.f32 %v216, %v214
    %v218 = vxor.u32 %v217, 2147483648
    %v219 = vsel %vm136, %v218, %v217
    %v220 = vsub.s32 4, %v196
    %v221 = vsel %vm136, %v220, %v196
    %v222 = vsel %vm135, %v28, %v219
    %v223 = vsel %vm135, 0, %v221
    %v224 = vcosq.f32.pop %v222
    %v225 = vsinq.f32.pop %v222
    %vm226 = vweird.f32 %v28
    %v227 = vadd.s32 %v223, 3
    %v228 = vand.u32 %v227, 3
    %vm229 = vcmp.lt.s32.totalorder %v228, 2
    %vm230 = vcmp.eq.s32.totalorder %v228, 0
    %v231 = vxor.u32 %v225, 2147483648
    %v232 = vsel %vm230, %v224, %v231
    %vm233 = vcmp.eq.s32.totalorder %v228, 2
    %v234 = vxor.u32 %v224, 2147483648
    %v235 = vsel %vm233, %v234, %v225
    %v236 = vsel %vm229, %v232, %v235
    %v237 = vsel %vm226, nan, %v236
    %v238 = vsel %vm30, 1, 0
    %v239 = vlaneseq
    %v240 = vshrl.u32 %v239, 7
    %v241 = vsub.s32 0, %v240
    %v242 = vrot.slane %v238, %v241
    %vm243 = vcmp.eq.s32.totalorder %v242, 1
    %v244 = vsel %vm243, %v133, %v237
    %245 = vst [vmem:[#allocation2] sm:$0xff] %v244
    // Predicated region
    $region14: #{tpu_custom_call.1} parent=1 // pred_check
      _
    $region15: #{tpu_custom_call.1} parent=1 // pred_check_branch
      %247 = sbr.rel (0) target = $region17
    $region16: #{tpu_custom_call.1} parent=1 // pred_region
      %s249 = ssub.s32 128, 128
      %250 = vsyncadd [#allocation3], %s249
      %s252 = sshll.u32 [#allocation2], 4
      %s253 = int_to_ptr.vmem [resolvable:$true] %s252
      %255 = dma.vmem_to_hbm [thread:$0]  %s253, 128, %s3, [#allocation3]
    $region17: #{tpu_custom_call.1} parent=1 // pred_fallthru
      _
    // Predicated region
    $region18: #{tpu_custom_call.1} parent=1 // pred_check
      _
    $region19: #{tpu_custom_call.1} parent=1 // pred_check_branch
      %257 = sbr.rel (0) target = $region21
    $region20: #{tpu_custom_call.1} parent=1 // pred_region
      %258 = dma.done [#allocation3], 128
    $region21: #{tpu_custom_call.1} parent=1 // pred_fallthru
      _
    %259 = vsyncpa [#allocation3], 1

</llo_original>
